<compile_context>
chip_gen: v7x
topology: tpu7x:2x2x1
jax: 0.10.0
libtpu: 0.0.40
codegen_flags: <defaults>
</compile_context>

<pallas_src>
import jax
import jax.numpy as jnp
from jax.experimental import pallas as pl
from jax.experimental.pallas import tpu as pltpu


def masked_clf_kernel(x_ref, w_ref, b_ref, o_ref, acc_ref):
    # Grid: (batch tiles [parallel], K tiles [arbitrary / reduction])
    k = pl.program_id(1)

    @pl.when(k == 0)
    def _init():
        # Seed accumulator with the (broadcast) bias; epilogue add is free.
        acc_ref[...] = jnp.broadcast_to(b_ref[...], acc_ref.shape)

    # bf16 x bf16 -> f32 accumulate on the MXU.
    acc_ref[...] += jnp.dot(
        x_ref[...], w_ref[...], preferred_element_type=jnp.float32
    )

    @pl.when(k == pl.num_programs(1) - 1)
    def _finalize():
        o_ref[...] = acc_ref[...].astype(o_ref.dtype)


def masked_clf(x_nchw, mask_chw, w, b, *, tb=None, tk=None):
    B, C, H, W_sp = x_nchw.shape
    D = C * H * W_sp
    N = w.shape[1]

    # --- Offline parameter fold (mask and W are both fixed at inference):
    #     (x * m).reshape(B, D) @ W == x.reshape(B, D) @ (m.reshape(D,1) * W)
    # Fold in f32, then cast to bf16 for the MXU.
    w_masked = (
        mask_chw.reshape(D, 1).astype(jnp.float32) * w.astype(jnp.float32)
    ).astype(jnp.bfloat16)

    # --- Pad the class dim to a lane-dense multiple of 128 (zero columns).
    n_pad = ((N + 127) // 128) * 128
    if n_pad != N:
        w_masked = jnp.pad(w_masked, ((0, 0), (0, n_pad - N)))
        b_padded = jnp.pad(b.astype(jnp.float32), (0, n_pad - N))
    else:
        b_padded = b.astype(jnp.float32)

    x_flat = x_nchw.reshape(B, D).astype(jnp.bfloat16)
    b2d = b_padded.reshape(1, n_pad)

    # --- Tile selection.
    # Batch tile: full batch when tiny; 256-multiples at scale (MXU width on
    # v6e/v7x).  K tile: 128-aligned so blocks stay (8,128)-legal once D is
    # actually tiled; 256 keeps 2x(tb*tk + tk*n_pad) bf16 buffers far under
    # the 64 MiB v7x VMEM budget even at real-image D.
    if tb is None:
        tb = B if B < 256 else 256
    if tk is None:
        tk = 256 if D % 256 == 0 else D
    assert B % tb == 0, "batch must be divisible by the batch tile"
    assert D % tk == 0, "feature dim must be divisible by the K tile"

    grid = (B // tb, D // tk)

    out_padded = pl.pallas_call(
        masked_clf_kernel,
        out_shape=jax.ShapeDtypeStruct((B, n_pad), jnp.float32),
        grid_spec=pltpu.PrefetchScalarGridSpec(
            num_scalar_prefetch=0,
            grid=grid,
            in_specs=[
                pl.BlockSpec((tb, tk), lambda i, k: (i, k)),      # x tile
                pl.BlockSpec((tk, n_pad), lambda i, k: (k, 0)),   # folded W
                pl.BlockSpec((1, n_pad), lambda i, k: (0, 0)),    # bias
            ],
            out_specs=pl.BlockSpec((tb, n_pad), lambda i, k: (i, 0)),
            scratch_shapes=[pltpu.VMEM((tb, n_pad), jnp.float32)],
        ),
        compiler_params=pltpu.CompilerParams(
            dimension_semantics=("parallel", "arbitrary")
        ),
    )(x_flat, w_masked, b2d)

    # Slice padded class columns back off (cheap XLA slice).
    return out_padded[:, :N]


if __name__ == "__main__":
    # Small shapes consistent with the forward pass: NCHW input image batch.
    B, C, H, W = 2, 4, 16, 16
    NUM_CLASSES = 8
    D = C * H * W

    key = jax.random.PRNGKey(0)
    kx, km, kw, kb = jax.random.split(key, 4)

    x = jax.random.normal(kx, (B, C, H, W), dtype=jnp.float32)
    # Deterministic synthetic parameters (no checkpoint loading).
    mask_param = jax.random.uniform(km, (C, H, W), dtype=jnp.float32)
    w = jax.random.normal(kw, (D, NUM_CLASSES), dtype=jnp.float32) * 0.02
    b = jax.random.normal(kb, (NUM_CLASSES,), dtype=jnp.float32) * 0.01

    out = masked_clf(x, mask_param, w, b)
    out = jax.block_until_ready(out)

    # Cross-check against a plain-JAX reference of the module's forward:
    # y = clf(mask(x)).  bf16 operands => relaxed tolerance.
    ref = (x * mask_param[None]).reshape(B, D) @ w + b[None]
    assert out.shape == ref.shape
    assert jnp.allclose(out, ref, atol=2e-2, rtol=2e-2), "mismatch vs reference"

    print("KERNEL_OK")
</pallas_src>

<mosaic_0001>
module attributes {stable_mosaic.version = 11 : i64} {
  func.func @masked_clf_kernel(%arg0: i32, %arg1: i32, %arg2: memref<2x256xbf16, #tpu.memory_space<vmem>>, %arg3: memref<256x128xbf16, #tpu.memory_space<vmem>>, %arg4: memref<1x128xf32, #tpu.memory_space<vmem>>, %arg5: memref<2x128xf32, #tpu.memory_space<vmem>>, %arg6: memref<2x128xf32, #tpu.memory_space<vmem>>) attributes {dimension_semantics = [#tpu.dimension_semantics<parallel>, #tpu.dimension_semantics<arbitrary>], iteration_bounds = array<i64: 1, 4>, scalar_prefetch = 0 : i64, scratch_operands = 1 : i64, tpu.core_type = #tpu.core_type<tc>, window_params = [{transform_indices = @transform_0, window_bounds = array<i64: 2, 256>}, {transform_indices = @transform_1, window_bounds = array<i64: 256, 128>}, {pipeline_mode = #tpu.pipeline_mode<synchronous>, transform_indices = @transform_2, window_bounds = array<i64: 1, 128>}, {transform_indices = @transform_3, window_bounds = array<i64: 2, 128>}]} {
    %c0_i32 = arith.constant 0 : i32
    %0 = arith.cmpi eq, %arg1, %c0_i32 : i32
    %1 = arith.extui %0 : i1 to i32
    %c0_i32_0 = arith.constant 0 : i32
    %2 = arith.cmpi ne, %1, %c0_i32_0 : i32
    scf.if %2 {
      %c0_9 = arith.constant 0 : index
      %c0_10 = arith.constant 0 : index
      %12 = vector.load %arg4[%c0_9, %c0_10] : memref<1x128xf32, #tpu.memory_space<vmem>>, vector<1x128xf32>
      %13 = vector.shape_cast %12 : vector<1x128xf32> to vector<1x128xf32>
      %14 = vector.broadcast %13 : vector<1x128xf32> to vector<2x128xf32>
      %c0_11 = arith.constant 0 : index
      %c0_12 = arith.constant 0 : index
      %15 = vector.load %arg6[%c0_11, %c0_12] : memref<2x128xf32, #tpu.memory_space<vmem>>, vector<2x128xf32>
      tpu.vector_store %arg6[%c0_11, %c0_12], %14 {strides = array<i32>} : memref<2x128xf32, #tpu.memory_space<vmem>>, vector<2x128xf32>,
    } else {
    }
    %c0 = arith.constant 0 : index
    %c0_1 = arith.constant 0 : index
    %3 = vector.load %arg6[%c0, %c0_1] : memref<2x128xf32, #tpu.memory_space<vmem>>, vector<2x128xf32>
    %c0_2 = arith.constant 0 : index
    %c0_3 = arith.constant 0 : index
    %4 = vector.load %arg2[%c0_2, %c0_3] : memref<2x256xbf16, #tpu.memory_space<vmem>>, vector<2x256xbf16>
    %c0_4 = arith.constant 0 : index
    %c0_5 = arith.constant 0 : index
    %5 = vector.load %arg3[%c0_4, %c0_5] : memref<256x128xbf16, #tpu.memory_space<vmem>>, vector<256x128xbf16>
    %cst = arith.constant dense<0.000000e+00> : vector<2x128xf32>
    %6 = tpu.matmul %4, %5, %cst {dimension_numbers = #tpu.dot_dimension_numbers<[1], [0], [0], [1], [0, 0, 1, 1], [], []>} : vector<2x256xbf16>, vector<256x128xbf16>, vector<2x128xf32> -> vector<2x128xf32>
    %7 = arith.addf %3, %6 : vector<2x128xf32>
    %c0_6 = arith.constant 0 : index
    %c0_7 = arith.constant 0 : index
    %8 = vector.load %arg6[%c0_6, %c0_7] : memref<2x128xf32, #tpu.memory_space<vmem>>, vector<2x128xf32>
    tpu.vector_store %arg6[%c0_6, %c0_7], %7 {strides = array<i32>} : memref<2x128xf32, #tpu.memory_space<vmem>>, vector<2x128xf32>,
    %c3_i32 = arith.constant 3 : i32
    %9 = arith.cmpi eq, %arg1, %c3_i32 : i32
    %10 = arith.extui %9 : i1 to i32
    %c0_i32_8 = arith.constant 0 : i32
    %11 = arith.cmpi ne, %10, %c0_i32_8 : i32
    scf.if %11 {
      %c0_9 = arith.constant 0 : index
      %c0_10 = arith.constant 0 : index
      %12 = vector.load %arg6[%c0_9, %c0_10] : memref<2x128xf32, #tpu.memory_space<vmem>>, vector<2x128xf32>
      %c0_11 = arith.constant 0 : index
      %c0_12 = arith.constant 0 : index
      %13 = vector.load %arg5[%c0_11, %c0_12] : memref<2x128xf32, #tpu.memory_space<vmem>>, vector<2x128xf32>
      tpu.vector_store %arg5[%c0_11, %c0_12], %12 {strides = array<i32>} : memref<2x128xf32, #tpu.memory_space<vmem>>, vector<2x128xf32>,
    } else {
    }
    return
  }
  func.func @transform_0(%arg0: i32, %arg1: i32) -> (i32, i32) {
    %c0_i32 = arith.constant 0 : i32
    return %arg0, %arg1 : i32, i32
  }
  func.func @transform_1(%arg0: i32, %arg1: i32) -> (i32, i32) {
    %c0_i32 = arith.constant 0 : i32
    %c0_i32_0 = arith.constant 0 : i32
    return %arg1, %c0_i32 : i32, i32
  }
  func.func @transform_2(%arg0: i32, %arg1: i32) -> (i32, i32) {
    %c0_i32 = arith.constant 0 : i32
    %c0_i32_0 = arith.constant 0 : i32
    %c0_i32_1 = arith.constant 0 : i32
    return %c0_i32, %c0_i32_0 : i32, i32
  }
  func.func @transform_3(%arg0: i32, %arg1: i32) -> (i32, i32) {
    %c0_i32 = arith.constant 0 : i32
    %c0_i32_0 = arith.constant 0 : i32
    return %arg0, %c0_i32 : i32, i32
  }
}

</mosaic_0001>

<llo_original>
// kernel: tpu_custom_call.1
$region0: #{tpu_custom_call.1}
  #allocation0 [shape = 'u32[]', space=smem, size = 0x4, offset = 0x4, fixed_abs, tag = 'smem constant byte address 0x4 - core index']
  #allocation1 [shape = 'u32[144,128]{1,0:T(1,128)}', space=vmem, size = 0x12000, scoped, tag = 'internal scratch']
  #allocation2 [shape = 'f32[2,128]{1,0:T(2,128)}', space=vmem, size = 0x400, scoped, tag = 'scratch operand']
  %s0 = inlined_call_operand.hbm [shape: bf16[2,1024], index: 0, kind: input, shape index: {}]
  %s1 = inlined_call_operand.hbm [shape: bf16[1024,128], index: 1, kind: input, shape index: {}]
  %s2 = inlined_call_operand.vmem [shape: f32[1,128], index: 2, kind: input, shape index: {}]
  %s3 = inlined_call_operand.hbm [shape: f32[2,128], index: 3, kind: output, shape index: {}]
  %s4 = sld [smem:[#allocation0]]
  $region61: #{tpu_custom_call.1} parent=0
    _
  %s6 = ssub.s32 1, %s4
  %s7 = scalar_select 0, %s6, %s4
  $region1: #{tpu_custom_call.1} parent=0
    #allocation3 [shape = 'u8[2048]{0}', space=vmem, size = 0x800, scoped, tag = 'input window, operand 0']
    #allocation4 [shape = 's32[2]{0}', space=sflag, size = 0x8, scoped, tag = 'scoped memory for tpu_custom_call.1']
    #allocation5 [shape = 's32[2]{0}', space=sflag, size = 0x8, scoped, tag = 'scoped memory for tpu_custom_call.1']
    #allocation6 [shape = 'u8[131072]{0}', space=vmem, size = 0x20000, scoped, tag = 'input window, operand 1']
    #allocation7 [shape = 's32[2]{0}', space=sflag, size = 0x8, scoped, tag = 'scoped memory for tpu_custom_call.1']
    #allocation8 [shape = 'u8[1024]{0}', space=vmem, size = 0x400, scoped, tag = 'output window, operand 0, single buffered']
    %8 = vsyncpa [#allocation4], 0
    %s9 = scalar_lea.sflag [#allocation4], 1
    %10 = vsyncpa %s9, 0
    %11 = vsyncpa [#allocation7], 0
    %s12 = scalar_lea.sflag [#allocation7], 1
    %13 = vsyncpa %s12, 0
    %14 = vsyncpa [#allocation5], 0
    loop: start=0, step=1, limit=6
    $region2: #{tpu_custom_call.1} parent=1 // loop_pre_header
      _
    $region3: #{tpu_custom_call.1} parent=1 // loop_header
      %s16 = sphi 0, %s20
      %p17 = scmp.ge.s32.totalorder %s16, 6
      %s23 = sphi 0, %s35
      %s24 = sphi 0, %s31
      %s25 = sphi 0, %s23
      %s26 = sphi 0, %s24
      %s27 = sphi 0, %s25
      %s28 = sphi 0, %s26
      %s40 = sphi 0, %s42
      %s43 = sphi 0, %s40
      %s44 = sphi 0, %s43
      %s60 = sphi 0, %s44
      %s66 = sphi 0, %s68
      %s69 = sphi 0, %s66
      %s70 = sphi 0, %s69
      %s86 = sphi 0, %s70
      %s90 = sphi 0, %s90
      %s92 = sphi 0, %s90
      %s93 = sphi 0, %s92
      %s107 = sphi 0, %s93
      %s113 = sphi 0, %s115
      %s116 = sphi 0, %s113
      %s117 = sphi 0, %s116
      %s133 = sphi 0, %s117
    $region4: #{tpu_custom_call.1} parent=1 // loop_header_branch
      %19 = sbr.rel (%p17) target = $region8
    $region5: #{tpu_custom_call.1} parent=1 // loop_body
      %s21 = ssub.s32 %s16, 1
      %s22 = ssub.s32 %s16, 2
      %s29 = sadd.s32 1, %s24
      %p30 = scmp.ge.s32.totalorder %s29, 4
      %s31 = scalar_select %p30, 0, %s29
      %s32 = sadd.s32 1, %s23
      %s33 = scalar_select %p30, %s32, %s23
      %p34 = scmp.ge.s32.totalorder %s33, 1
      %s35 = scalar_select %p34, 0, %s33
      %s36 = ssub.s32 %s23, %s35
      %s37 = ssub.s32 %s24, %s31
      %s38 = sor.u32 %s36, %s37
      %p39 = scmp.eq.s32.totalorder %s38, 0
      %s41 = sadd.s32 %s40, 1
      %s42 = scalar_select %p39, %s40, %s41
      %p45 = pneg %p39
      %p46 = scmp.eq.s32.totalorder %s16, 3
      %p47 = por %p45, %p46
      %p48 = scmp.ne.s32.totalorder %s40, %s43
      %p49 = scmp.eq.s32.totalorder %s16, 0
      %p50 = por %p48, %p49
      %p51 = scmp.ne.s32.totalorder %s40, %s43
      %p52 = scmp.eq.s32.totalorder %s21, 3
      %p53 = por %p51, %p52
      %p54 = scmp.ne.s32.totalorder %s43, %s44
      %p55 = scmp.eq.s32.totalorder %s21, 0
      %p56 = por %p54, %p55
      %p57 = scmp.ne.s32.totalorder %s43, %s44
      %p58 = scmp.eq.s32.totalorder %s22, 3
      %p59 = por %p57, %p58
      %p61 = scmp.ne.s32.totalorder %s44, %s60
      %p62 = scmp.eq.s32.totalorder %s22, 0
      %p63 = por %p61, %p62
      %s64 = ssub.s32 %s24, %s31
      %p65 = scmp.eq.s32.totalorder %s64, 0
      %s67 = sadd.s32 %s66, 1
      %s68 = scalar_select %p65, %s66, %s67
      %p71 = pneg %p65
      %p72 = scmp.eq.s32.totalorder %s16, 3
      %p73 = por %p71, %p72
      %p74 = scmp.ne.s32.totalorder %s66, %s69
      %p75 = scmp.eq.s32.totalorder %s16, 0
      %p76 = por %p74, %p75
      %p77 = scmp.ne.s32.totalorder %s66, %s69
      %p78 = scmp.eq.s32.totalorder %s21, 3
      %p79 = por %p77, %p78
      %p80 = scmp.ne.s32.totalorder %s69, %s70
      %p81 = scmp.eq.s32.totalorder %s21, 0
      %p82 = por %p80, %p81
      %p83 = scmp.ne.s32.totalorder %s69, %s70
      %p84 = scmp.eq.s32.totalorder %s22, 3
      %p85 = por %p83, %p84
      %p87 = scmp.ne.s32.totalorder %s70, %s86
      %p88 = scmp.eq.s32.totalorder %s22, 0
      %p89 = por %p87, %p88
      %s91 = sadd.s32 %s90, 1
      %p94 = scmp.eq.s32.totalorder %s16, 3
      %p95 = scmp.ne.s32.totalorder %s90, %s92
      %p96 = scmp.eq.s32.totalorder %s16, 0
      %p97 = por %p95, %p96
      %p98 = scmp.ne.s32.totalorder %s90, %s92
      %p99 = scmp.eq.s32.totalorder %s21, 3
      %p100 = por %p98, %p99
      %p101 = scmp.ne.s32.totalorder %s92, %s93
      %p102 = scmp.eq.s32.totalorder %s21, 0
      %p103 = por %p101, %p102
      %p104 = scmp.ne.s32.totalorder %s92, %s93
      %p105 = scmp.eq.s32.totalorder %s22, 3
      %p106 = por %p104, %p105
      %p108 = scmp.ne.s32.totalorder %s93, %s107
      %p109 = scmp.eq.s32.totalorder %s22, 0
      %p110 = por %p108, %p109
      %s111 = ssub.s32 %s23, %s35
      %p112 = scmp.eq.s32.totalorder %s111, 0
      %s114 = sadd.s32 %s113, 1
      %s115 = scalar_select %p112, %s113, %s114
      %p118 = pneg %p112
      %p119 = scmp.eq.s32.totalorder %s16, 3
      %p120 = por %p118, %p119
      %p121 = scmp.ne.s32.totalorder %s113, %s116
      %p122 = scmp.eq.s32.totalorder %s16, 0
      %p123 = por %p121, %p122
      %p124 = scmp.ne.s32.totalorder %s113, %s116
      %p125 = scmp.eq.s32.totalorder %s21, 3
      %p126 = por %p124, %p125
      %p127 = scmp.ne.s32.totalorder %s116, %s117
      %p128 = scmp.eq.s32.totalorder %s21, 0
      %p129 = por %p127, %p128
      %p130 = scmp.ne.s32.totalorder %s116, %s117
      %p131 = scmp.eq.s32.totalorder %s22, 3
      %p132 = por %p130, %p131
      %p134 = scmp.ne.s32.totalorder %s117, %s133
      %p135 = scmp.eq.s32.totalorder %s22, 0
      %p136 = por %p134, %p135
      %p137 = scmp.le.s32.totalorder 1, %s16
      %p138 = scmp.lt.s32.totalorder %s16, 5
      %p139 = pnand %p137, %p138
      %p140 = pneg %p139
      // Predicated region
      $region9: #{tpu_custom_call.1} parent=5 // pred_check
        _
      $region10: #{tpu_custom_call.1} parent=5 // pred_check_branch
        %142 = sbr.rel (%p139) target = $region12
      $region11: #{tpu_custom_call.1} parent=5 // pred_region
        %s143 = ssub.s32 %s16, 1
        // Predicated region
        $region13: #{tpu_custom_call.1} parent=11 // pred_check
          %p144 = pneg %p103
        $region14: #{tpu_custom_call.1} parent=11 // pred_check_branch
          %146 = sbr.rel (%p144) target = $region16
        $region15: #{tpu_custom_call.1} parent=11 // pred_region
          _
        $region16: #{tpu_custom_call.1} parent=11 // pred_fallthru
          _
      $region12: #{tpu_custom_call.1} parent=5 // pred_fallthru
        _
      %p147 = scmp.lt.s32.totalorder %s16, 4
      // Predicated region
      $region17: #{tpu_custom_call.1} parent=5 // pred_check
        %p148 = pneg %p147
      $region18: #{tpu_custom_call.1} parent=5 // pred_check_branch
        %150 = sbr.rel (%p148) target = $region20
      $region19: #{tpu_custom_call.1} parent=5 // pred_region
        // Predicated region
        $region21: #{tpu_custom_call.1} parent=19 // pred_check
          %p151 = pneg %p50
        $region22: #{tpu_custom_call.1} parent=19 // pred_check_branch
          %153 = sbr.rel (%p151) target = $region24
        $region23: #{tpu_custom_call.1} parent=19 // pred_region
          %s154 = sand.u32 %s40, 1
          %s155 = scalar_lea.sflag [#allocation4], %s154
          %s156 = sand.u32 %s40, 1
          %s157 = smul.addr %s156, 2
          %s158 = scalar_lea.vmem [#allocation3], %s157
          %s159 = smul.u32 2, %s24
          %s161 = ssub.s32 32, 32
          %162 = vsyncadd %s155, %s161
          %s163 = smul.addr %s23, 8
          %s164 = sadd.s32 %s159, %s163
          %s165 = smul.addr %s164, 16
          %s166 = scalar_lea.hbm %s0, %s165
          %s168 = sshll.u32 %s158, 4
          %s169 = int_to_ptr.vmem [resolvable:$true] %s168
          %171 = dma.hbm_to_vmem [thread:$0]  %s166, 32, %s169, %s155
        $region24: #{tpu_custom_call.1} parent=19 // pred_fallthru
          _
        // Predicated region
        $region25: #{tpu_custom_call.1} parent=19 // pred_check
          %p172 = pneg %p76
        $region26: #{tpu_custom_call.1} parent=19 // pred_check_branch
          %174 = sbr.rel (%p172) target = $region28
        $region27: #{tpu_custom_call.1} parent=19 // pred_region
          %s175 = sand.u32 %s66, 1
          %s176 = scalar_lea.sflag [#allocation7], %s175
          %s177 = sand.u32 %s66, 1
          %s178 = smul.addr %s177, 128
          %s179 = scalar_lea.vmem [#allocation6], %s178
          %s180 = smul.u32 32, %s24
          %s182 = ssub.s32 2048, 2048
          %183 = vsyncadd %s176, %s182
          %s184 = smul.addr %s180, 64
          %s185 = scalar_lea.hbm %s1, %s184
          %s186 = sshll.u32 %s179, 4
          %s187 = int_to_ptr.vmem [resolvable:$true] %s186
          %192 = dma.hbm_to_vmem [thread:$0]  %s185, 2048, %s187, %s176, 64, 64, 4
        $region28: #{tpu_custom_call.1} parent=19 // pred_fallthru
          _
      $region20: #{tpu_custom_call.1} parent=5 // pred_fallthru
        _
      %p193 = scmp.le.s32.totalorder 1, %s16
      %p194 = scmp.lt.s32.totalorder %s16, 5
      %p195 = pnand %p193, %p194
      %p196 = pneg %p195
      // Predicated region
      $region29: #{tpu_custom_call.1} parent=5 // pred_check
        _
      $region30: #{tpu_custom_call.1} parent=5 // pred_check_branch
        %198 = sbr.rel (%p195) target = $region32
      $region31: #{tpu_custom_call.1} parent=5 // pred_region
        %s199 = ssub.s32 %s16, 1
        %s200 = sand.u32 %s43, 1
        %s201 = scalar_lea.sflag [#allocation4], %s200
        %s202 = sand.u32 %s43, 1
        %s203 = smul.addr %s202, 2
        %s204 = scalar_lea.vmem [#allocation3], %s203
        // Predicated region
        $region33: #{tpu_custom_call.1} parent=31 // pred_check
          %p205 = pneg %p56
        $region34: #{tpu_custom_call.1} parent=31 // pred_check_branch
          %207 = sbr.rel (%p205) target = $region36
        $region35: #{tpu_custom_call.1} parent=31 // pred_region
          %208 = dma.done %s201, 32
        $region36: #{tpu_custom_call.1} parent=31 // pred_fallthru
          _
        %s209 = sand.u32 %s69, 1
        %s210 = scalar_lea.sflag [#allocation7], %s209
        %s211 = sand.u32 %s69, 1
        %s212 = smul.addr %s211, 128
        %s213 = scalar_lea.vmem [#allocation6], %s212
        // Predicated region
        $region37: #{tpu_custom_call.1} parent=31 // pred_check
          %p214 = pneg %p82
        $region38: #{tpu_custom_call.1} parent=31 // pred_check_branch
          %216 = sbr.rel (%p214) target = $region40
        $region39: #{tpu_custom_call.1} parent=31 // pred_region
          %217 = dma.done %s210, 2048
        $region40: #{tpu_custom_call.1} parent=31 // pred_fallthru
          _
        %s218 = sand.u32 %s43, 1
        %s219 = scalar_lea.sflag [#allocation4], %s218
        %s220 = sand.u32 %s43, 1
        %s221 = smul.addr %s220, 2
        %s222 = scalar_lea.vmem [#allocation3], %s221
        %p223 = pneg %p56
        %p224 = pneg %p53
        %s225 = sand.u32 %s69, 1
        %s226 = scalar_lea.sflag [#allocation7], %s225
        %s227 = sand.u32 %s69, 1
        %s228 = smul.addr %s227, 128
        %s229 = scalar_lea.vmem [#allocation6], %s228
        %p230 = pneg %p82
        %p231 = pneg %p79
        %p232 = pneg %p103
        %p233 = pneg %p100
        %p234 = pneg %p129
        %p235 = pneg %p126
        %s236 = smul.u32 2, %s26
        %s237 = smul.u32 32, %s26
        %p239 = scmp.eq.s32.totalorder %s26, 0
        // Predicated region
        $region41: #{tpu_custom_call.1} parent=31 // pred_check
          %p240 = pneg %p239
        $region42: #{tpu_custom_call.1} parent=31 // pred_check_branch
          %242 = sbr.rel (%p240) target = $region44
        $region43: #{tpu_custom_call.1} parent=31 // pred_region
          %v243 = vld [vmem:[%s2] sm:$0x1]
          %v245 = vlaneseq
          %v246 = vshrl.u32 %v245, 7
          %v247 = vsub.s32 0, %v246
          %v248 = vrot.slane %v243, %v247
          %250 = vst [vmem:[#allocation2] sm:$0x3] %v248
        $region44: #{tpu_custom_call.1} parent=31 // pred_fallthru
          _
        %v251 = vld [vmem:[#allocation2] sm:$0x3]
        %v252 = vld [vmem:[%s204] sm:$0x3]
        %v253 = vld [vmem:[%s213] sm:$0xf]
        %v254 = vld [vmem:[%s213 + $0x4] sm:$0xf]
        %v255 = vld [vmem:[%s213 + $0x8] sm:$0xf]
        %v256 = vld [vmem:[%s213 + $0xc] sm:$0xf]
        %v257 = vld [vmem:[%s213 + $0x10] sm:$0xf]
        %v258 = vld [vmem:[%s213 + $0x14] sm:$0xf]
        %v259 = vld [vmem:[%s213 + $0x18] sm:$0xf]
        %v260 = vld [vmem:[%s213 + $0x1c] sm:$0xf]
        %v261 = vld [vmem:[%s213 + $0x20] sm:$0xf]
        %v262 = vld [vmem:[%s213 + $0x24] sm:$0xf]
        %v263 = vld [vmem:[%s213 + $0x28] sm:$0xf]
        %v264 = vld [vmem:[%s213 + $0x2c] sm:$0xf]
        %v265 = vld [vmem:[%s213 + $0x30] sm:$0xf]
        %v266 = vld [vmem:[%s213 + $0x34] sm:$0xf]
        %v267 = vld [vmem:[%s213 + $0x38] sm:$0xf]
        %v268 = vld [vmem:[%s213 + $0x3c] sm:$0xf]
        %v269 = vld [vmem:[%s213 + $0x40] sm:$0xf]
        %v270 = vld [vmem:[%s213 + $0x44] sm:$0xf]
        %v271 = vld [vmem:[%s213 + $0x48] sm:$0xf]
        %v272 = vld [vmem:[%s213 + $0x4c] sm:$0xf]
        %v273 = vld [vmem:[%s213 + $0x50] sm:$0xf]
        %v274 = vld [vmem:[%s213 + $0x54] sm:$0xf]
        %v275 = vld [vmem:[%s213 + $0x58] sm:$0xf]
        %v276 = vld [vmem:[%s213 + $0x5c] sm:$0xf]
        %v277 = vld [vmem:[%s213 + $0x60] sm:$0xf]
        %v278 = vld [vmem:[%s213 + $0x64] sm:$0xf]
        %v279 = vld [vmem:[%s213 + $0x68] sm:$0xf]
        %v280 = vld [vmem:[%s213 + $0x6c] sm:$0xf]
        %v281 = vld [vmem:[%s213 + $0x70] sm:$0xf]
        %v282 = vld [vmem:[%s213 + $0x74] sm:$0xf]
        %v283 = vld [vmem:[%s213 + $0x78] sm:$0xf]
        %v284 = vld [vmem:[%s213 + $0x7c] sm:$0xf]
        %v287 = vunpack.c.l.s4 1966171168
        %v288 = vunpack.c.0.s8 %v287
        %v289 = vlaneseq
        %v290 = vshrl.u32 %v289, 7
        %v291 = vsub.s32 %v288, %v290
        %v292 = vrot.slane %v252, %v291
        %v293 = vcombine.high %v292, %v292
        %v295 = vunpack.c.l.s4 1966171168
        %v296 = vunpack.c.0.s8 %v295
        %v297 = vlaneseq
        %v298 = vshrl.u32 %v297, 7
        %v299 = vsub.s32 %v296, %v298
        %v300 = vrot.slane %v292, %v299
        %v302 = vunpack.c.l.s4 1966171168
        %v303 = vunpack.c.0.s8 %v302
        %v304 = vlaneseq
        %v305 = vshrl.u32 %v304, 7
        %v306 = vsub.s32 %v303, %v305
        %v307 = vrot.slane %v293, %v306
        %v342 = vunpack.c.l.b16 %v253
        %v343 = vunpack.c.l.b16 %v254
        %v344 = vunpack.c.l.b16 %v255
        %v345 = vunpack.c.l.b16 %v256
        %v346 = vunpack.c.l.b16 %v257
        %v347 = vunpack.c.l.b16 %v258
        %v348 = vunpack.c.l.b16 %v259
        %v349 = vunpack.c.l.b16 %v260
        %v350 = vunpack.c.l.b16 %v261
        %v351 = vunpack.c.l.b16 %v262
        %v352 = vunpack.c.l.b16 %v263
        %v353 = vunpack.c.l.b16 %v264
        %v354 = vunpack.c.l.b16 %v265
        %v355 = vunpack.c.l.b16 %v266
        %v356 = vunpack.c.l.b16 %v267
        %v357 = vunpack.c.l.b16 %v268
        %v358 = vunpack.c.l.b16 %v269
        %v359 = vunpack.c.l.b16 %v270
        %v360 = vunpack.c.l.b16 %v271
        %v361 = vunpack.c.l.b16 %v272
        %v362 = vunpack.c.l.b16 %v273
        %v363 = vunpack.c.l.b16 %v274
        %v364 = vunpack.c.l.b16 %v275
        %v365 = vunpack.c.l.b16 %v276
        %v366 = vunpack.c.l.b16 %v277
        %v367 = vunpack.c.l.b16 %v278
        %v368 = vunpack.c.l.b16 %v279
        %v369 = vunpack.c.l.b16 %v280
        %v370 = vunpack.c.l.b16 %v281
        %v371 = vunpack.c.l.b16 %v282
        %v372 = vunpack.c.l.b16 %v283
        %v373 = vunpack.c.l.b16 %v284
        %v374 = vpack.c.b16 %v343, %v342
        %v375 = vpack.c.b16 %v345, %v344
        %v376 = vpack.c.b16 %v347, %v346
        %v377 = vpack.c.b16 %v349, %v348
        %v378 = vpack.c.b16 %v351, %v350
        %v379 = vpack.c.b16 %v353, %v352
        %v380 = vpack.c.b16 %v355, %v354
        %v381 = vpack.c.b16 %v357, %v356
        %v382 = vpack.c.b16 %v359, %v358
        %v383 = vpack.c.b16 %v361, %v360
        %v384 = vpack.c.b16 %v363, %v362
        %v385 = vpack.c.b16 %v365, %v364
        %v386 = vpack.c.b16 %v367, %v366
        %v387 = vpack.c.b16 %v369, %v368
        %v388 = vpack.c.b16 %v371, %v370
        %v389 = vpack.c.b16 %v373, %v372
        %406 = vmatprep.subr.bf16.mxu0 0
        %407 = vmatpush1.bf16.msra.mxu0 %v374
        %408 = vmatprep.subr.bf16.mxu0 0
        %409 = vmatpush1.bf16.msra.mxu0 %v375
        %410 = vmatprep.subr.bf16.mxu0 0
        %411 = vmatpush1.bf16.msra.mxu0 %v376
        %412 = vmatprep.subr.bf16.mxu0 0
        %413 = vmatpush1.bf16.msra.mxu0 %v377
        %414 = vmatprep.subr.bf16.mxu0 0
        %415 = vmatpush1.bf16.msra.mxu0 %v378
        %416 = vmatprep.subr.bf16.mxu0 0
        %417 = vmatpush1.bf16.msra.mxu0 %v379
        %418 = vmatprep.subr.bf16.mxu0 0
        %419 = vmatpush1.bf16.msra.mxu0 %v380
        %420 = vmatprep.subr.bf16.mxu0 0
        %421 = vmatpush1.bf16.msra.mxu0 %v381
        %422 = vmatprep.subr.bf16.mxu0 0
        %423 = vmatpush1.bf16.msra.mxu0 %v382
        %424 = vmatprep.subr.bf16.mxu0 0
        %425 = vmatpush1.bf16.msra.mxu0 %v383
        %426 = vmatprep.subr.bf16.mxu0 0
        %427 = vmatpush1.bf16.msra.mxu0 %v384
        %428 = vmatprep.subr.bf16.mxu0 0
        %429 = vmatpush1.bf16.msra.mxu0 %v385
        %430 = vmatprep.subr.bf16.mxu0 0
        %431 = vmatpush1.bf16.msra.mxu0 %v386
        %432 = vmatprep.subr.bf16.mxu0 0
        %433 = vmatpush1.bf16.msra.mxu0 %v387
        %434 = vmatprep.subr.bf16.mxu0 0
        %435 = vmatpush1.bf16.msra.mxu0 %v388
        %436 = vmatprep.subr.bf16.mxu0 0
        %437 = vmatpush1.bf16.msra.mxu0 %v389
        %438 = vmatprep.mubr.bf16.mxu0 %v307
        %439 = vmatmul.mubr.bf16.gmra.mrb[0].mxu0 %v300
        %v440 = vpop.f32.mrb[0].mxu0
        %v441 = vadd.f32 0.0, %v440
        %v442 = vpop.f32.mrb[0].mxu0
        %v443 = vpop.f32.mrb[0].mxu0
        %v444 = vpop.f32.mrb[0].mxu0
        %445 = vdwg.mxu0
        %v446 = vadd.f32 %v251, %v441
        %447 = vst [vmem:[#allocation2] sm:$0x3] %v446
        %p448 = scmp.eq.s32.totalorder %s26, 3
        // Predicated region
        $region45: #{tpu_custom_call.1} parent=31 // pred_check
          %p449 = pneg %p448
        $region46: #{tpu_custom_call.1} parent=31 // pred_check_branch
          %451 = sbr.rel (%p449) target = $region48
        $region47: #{tpu_custom_call.1} parent=31 // pred_region
          %v452 = vld [vmem:[#allocation2] sm:$0x3]
          %453 = vst [vmem:[#allocation8] sm:$0x3] %v452
        $region48: #{tpu_custom_call.1} parent=31 // pred_fallthru
          _
        // Predicated region
        $region49: #{tpu_custom_call.1} parent=31 // pred_check
          %p454 = pneg %p126
        $region50: #{tpu_custom_call.1} parent=31 // pred_check_branch
          %456 = sbr.rel (%p454) target = $region52
        $region51: #{tpu_custom_call.1} parent=31 // pred_region
          %s458 = ssub.s32 32, 32
          %459 = vsyncadd [#allocation5], %s458
          %s460 = smul.addr %s25, 32
          %s461 = scalar_lea.hbm %s3, %s460
          %s463 = sshll.u32 [#allocation8], 4
          %s464 = int_to_ptr.vmem [resolvable:$true] %s463
          %466 = dma.vmem_to_hbm [thread:$0]  %s464, 32, %s461, [#allocation5]
        $region52: #{tpu_custom_call.1} parent=31 // pred_fallthru
          _
        // Predicated region
        $region53: #{tpu_custom_call.1} parent=31 // pred_check
          %p467 = pneg %p126
        $region54: #{tpu_custom_call.1} parent=31 // pred_check_branch
          %469 = sbr.rel (%p467) target = $region56
        $region55: #{tpu_custom_call.1} parent=31 // pred_region
          %470 = dma.done [#allocation5], 32
        $region56: #{tpu_custom_call.1} parent=31 // pred_fallthru
          _
      $region32: #{tpu_custom_call.1} parent=5 // pred_fallthru
        _
      %p471 = scmp.le.s32.totalorder 2, %s16
      // Predicated region
      $region57: #{tpu_custom_call.1} parent=5 // pred_check
        %p472 = pneg %p471
      $region58: #{tpu_custom_call.1} parent=5 // pred_check_branch
        %474 = sbr.rel (%p472) target = $region60
      $region59: #{tpu_custom_call.1} parent=5 // pred_region
        %s475 = ssub.s32 %s16, 2
      $region60: #{tpu_custom_call.1} parent=5 // pred_fallthru
        _
    $region6: #{tpu_custom_call.1} parent=1 // loop_footer
      %s20 = sadd.s32 1, %s16
    $region7: #{tpu_custom_call.1} parent=1 // loop_footer_branch
      %15 = sbr.rel target = $region3
    $region8: #{tpu_custom_call.1} parent=1 // loop_exit
      _
    %476 = vsyncpa [#allocation4], 1
    %s477 = scalar_lea.sflag [#allocation4], 1
    %478 = vsyncpa %s477, 1
    %479 = vsyncpa [#allocation7], 1
    %s480 = scalar_lea.sflag [#allocation7], 1
    %481 = vsyncpa %s480, 1
    %482 = vsyncpa [#allocation5], 1
    %s483 = scalar_lea.sflag [#allocation5], 1
    %484 = vsyncpa %s483, 1

</llo_original>
